<compile_context>
chip_gen: v6e
topology: v6e:2x2x1
jax: 0.10.0
libtpu: 0.0.40
codegen_flags: <defaults>
</compile_context>

<pallas_src>
import functools

import jax
import jax.numpy as jnp
from jax import lax
from jax.experimental import pallas as pl
from jax.experimental.pallas import tpu as pltpu

_LANES = 128


def _default_row_tile():
    # v5e (and older gens) have a 16 MiB default scoped-VMEM budget -> keep the
    # double-buffered input blocks at ~8 MiB.  v6e/v7x (32 MiB scoped default,
    # v7x has 64 MiB physical VMEM) take an 8192-row tile (2 inputs x 2 bufs x
    # 4 MiB = 16 MiB) comfortably without raising vmem_limit_bytes.
    try:
        kind = jax.devices()[0].device_kind.lower()
    except Exception:
        return 4096
    if ("v6" in kind) or ("7" in kind):
        return 8192
    return 4096


def _qfocal_block_kernel(pred_ref, true_ref, out_ref, *,
                         gamma, alpha, row_tile, tail_elems, has_tail):
    x = pred_ref[...].astype(jnp.float32)
    y = true_ref[...].astype(jnp.float32)

    # exp(-|x|) shared by the numerically-stable BCE term and the sigmoid.
    e = jnp.exp(-jnp.abs(x))
    # BCEWithLogits (reduction='none'): max(x,0) - x*y + log1p(exp(-|x|))
    bce = jnp.maximum(x, 0.0) - x * y + jnp.log1p(e)
    # sigmoid(x) = where(x>=0, 1, e) / (1 + e)   with e = exp(-|x|)
    # approx reciprocal -> single EUP vrcp, keeps the VALU chain short.
    sig = jnp.where(x >= 0.0, 1.0, e) * pl.reciprocal(1.0 + e, approx=True)

    # y*a + (1-y)*(1-a) == y*(2a-1) + (1-a), constants folded at trace time.
    alpha_factor = y * (2.0 * alpha - 1.0) + (1.0 - alpha)
    d = jnp.abs(y - sig)
    if gamma == 1.0:
        modulating = d
    elif gamma == 1.5:
        modulating = d * jnp.sqrt(d)          # |d|**1.5, safe at d == 0
    elif gamma == 2.0:
        modulating = d * d
    else:
        # TODO(synk): generic power lowers to exp+log (2 extra EUP ops/elem)
        # and has NaN gradient at d==0 if a backward pass is ever added.
        modulating = jnp.power(d, gamma)

    loss = bce * alpha_factor * modulating

    def fold(v):
        # Fold the row tile onto an (8,128) vreg-shaped partial (pure VPU adds;
        # the final cross-lane/sublane reduction happens once, outside).
        return v.reshape(row_tile // 8, 8, _LANES).sum(axis=0)

    if has_tail:
        is_last = pl.program_id(0) == pl.num_programs(0) - 1

        @pl.when(is_last)
        def _():
            # Block-relative indices (tail_elems < row_tile*128, int32-safe).
            # The select (not a multiply) discards garbage/NaN from the ragged
            # out-of-range rows of the partial last block.
            r = lax.broadcasted_iota(jnp.int32, (row_tile, _LANES), 0)
            c = lax.broadcasted_iota(jnp.int32, (row_tile, _LANES), 1)
            valid = (r * _LANES + c) < tail_elems
            out_ref[...] = fold(jnp.where(valid, loss, 0.0))

        @pl.when(jnp.logical_not(is_last))
        def _():
            out_ref[...] = fold(loss)
    else:
        out_ref[...] = fold(loss)


def qfocal_loss(pred, true, gamma=1.5, alpha=0.25, reduction="mean",
                row_tile=None):
    """QFocalLoss wrapping BCEWithLogitsLoss. pred/true: same shape (e.g. NCHW)."""
    assert pred.shape == true.shape
    total = int(pred.size)

    if row_tile is None:
        row_tile = _default_row_tile()

    # Lane-dense (rows, 128) view; ragged last block handled in-kernel.
    rows = max(8, pl.cdiv(total, _LANES))
    row_tile = max(8, min((int(row_tile) // 8) * 8, (rows // 8) * 8))
    num_blocks = pl.cdiv(rows, row_tile)
    slab = rows * _LANES                       # elements the 2-D view must hold

    pred_flat = pred.reshape(-1)
    true_flat = true.reshape(-1)
    if slab != total:
        # Only for non-128-aligned (or tiny) totals; pad < 128 (or < 1024) elems.
        pred_flat = jnp.pad(pred_flat, (0, slab - total))
        true_flat = jnp.pad(true_flat, (0, slab - total))
    pred2d = pred_flat.reshape(rows, _LANES)   # pure reshape when slab == total
    true2d = true_flat.reshape(rows, _LANES)

    # Valid elements inside the last block; < row_tile*128 so int32 math is safe.
    tail_elems = total - (num_blocks - 1) * row_tile * _LANES
    has_tail = tail_elems != row_tile * _LANES

    kernel = functools.partial(
        _qfocal_block_kernel,
        gamma=float(gamma), alpha=float(alpha),
        row_tile=row_tile, tail_elems=tail_elems, has_tail=has_tail)

    in_block = pl.BlockSpec((row_tile, _LANES), lambda i: (i, 0))
    itemsize = jnp.dtype(pred.dtype).itemsize

    partials = pl.pallas_call(
        kernel,
        out_shape=jax.ShapeDtypeStruct((num_blocks * 8, _LANES), jnp.float32),
        grid_spec=pltpu.PrefetchScalarGridSpec(
            num_scalar_prefetch=0,
            grid=(num_blocks,),
            in_specs=[in_block, in_block],
            out_specs=pl.BlockSpec((8, _LANES), lambda i: (i, 0)),
        ),
        compiler_params=pltpu.CompilerParams(
            dimension_semantics=("parallel",)),
        cost_estimate=pl.CostEstimate(
            flops=22 * slab,
            transcendentals=4 * slab,
            bytes_accessed=2 * itemsize * slab + 4 * num_blocks * 8 * _LANES),
    )(pred2d, true2d)

    loss_sum = jnp.sum(partials)

    if reduction == "mean":
        return loss_sum / jnp.float32(total)
    elif reduction == "sum":
        return loss_sum
    else:
        # TODO(synk): 'none' reduction (elementwise output) not wired up; the
        # wrapped BCEWithLogitsLoss default reduction is 'mean'.
        raise NotImplementedError("reduction='none' not implemented")


def _qfocal_ref(pred, true, gamma=1.5, alpha=0.25):
    x = pred.astype(jnp.float32)
    y = true.astype(jnp.float32)
    bce = jnp.maximum(x, 0.0) - x * y + jnp.log1p(jnp.exp(-jnp.abs(x)))
    p = jax.nn.sigmoid(x)
    af = y * alpha + (1.0 - y) * (1.0 - alpha)
    mf = jnp.abs(y - p) ** gamma
    return (bce * af * mf).mean()


if __name__ == "__main__":
    key = jax.random.PRNGKey(0)
    k1, k2 = jax.random.split(key)

    # NCHW, small shapes: batch=2, channels=4, spatial=16x16 (128-aligned total
    # -> zero-copy path, single full block, no masking).
    pred = jax.random.normal(k1, (2, 4, 16, 16), dtype=jnp.float32)
    true = (jax.random.uniform(k2, (2, 4, 16, 16)) > 0.5).astype(jnp.float32)

    out = jax.block_until_ready(qfocal_loss(pred, true, gamma=1.5, alpha=0.25))
    ref = _qfocal_ref(pred, true)
    assert jnp.allclose(out, ref, rtol=2e-3, atol=1e-5), (out, ref)

    # Non-128-aligned total exercises the minimal pad + ragged last block mask.
    k3, k4 = jax.random.split(k1)
    pred2 = jax.random.normal(k3, (3, 5, 7, 11), dtype=jnp.float32)
    true2 = (jax.random.uniform(k4, (3, 5, 7, 11)) > 0.5).astype(jnp.float32)
    out2 = jax.block_until_ready(qfocal_loss(pred2, true2))
    ref2 = _qfocal_ref(pred2, true2)
    assert jnp.allclose(out2, ref2, rtol=2e-3, atol=1e-5), (out2, ref2)

    # 128-aligned but non-divisible row count + forced small tile exercises
    # multi-block parallel grid with a masked partial last block (zero-copy).
    k5, k6 = jax.random.split(k2)
    pred3 = jax.random.normal(k5, (2, 3, 40, 40), dtype=jnp.float32)
    true3 = (jax.random.uniform(k6, (2, 3, 40, 40)) > 0.5).astype(jnp.float32)
    out3 = jax.block_until_ready(qfocal_loss(pred3, true3, row_tile=8))
    ref3 = _qfocal_ref(pred3, true3)
    assert jnp.allclose(out3, ref3, rtol=2e-3, atol=1e-5), (out3, ref3)

    print("KERNEL_OK")
</pallas_src>

<mosaic_0001>
module attributes {stable_mosaic.version = 11 : i64} {
  func.func @_qfocal_block_kernel(%arg0: i32, %arg1: memref<16x128xf32, #tpu.memory_space<vmem>>, %arg2: memref<16x128xf32, #tpu.memory_space<vmem>>, %arg3: memref<8x128xf32, #tpu.memory_space<vmem>>) attributes {dimension_semantics = [#tpu.dimension_semantics<parallel>], iteration_bounds = array<i64: 1>, scalar_prefetch = 0 : i64, scratch_operands = 0 : i64, tpu.core_type = #tpu.core_type<tc>, window_params = [{transform_indices = @transform_0, window_bounds = array<i64: 16, 128>}, {transform_indices = @transform_1, window_bounds = array<i64: 16, 128>}, {transform_indices = @transform_2, window_bounds = array<i64: 8, 128>}]} {
    %c0 = arith.constant 0 : index
    %c0_0 = arith.constant 0 : index
    %0 = vector.load %arg1[%c0, %c0_0] : memref<16x128xf32, #tpu.memory_space<vmem>>, vector<16x128xf32>
    %c0_1 = arith.constant 0 : index
    %c0_2 = arith.constant 0 : index
    %1 = vector.load %arg2[%c0_1, %c0_2] : memref<16x128xf32, #tpu.memory_space<vmem>>, vector<16x128xf32>
    %2 = math.absf %0 : vector<16x128xf32>
    %cst = arith.constant 0.000000e+00 : f32
    %3 = vector.broadcast %cst : f32 to vector<16x128xf32>
    %4 = arith.subf %3, %2 : vector<16x128xf32>
    %5 = math.exp %4 : vector<16x128xf32>
    %cst_3 = arith.constant 0.000000e+00 : f32
    %6 = vector.broadcast %cst_3 : f32 to vector<16x128xf32>
    %7 = arith.maximumf %0, %6 : vector<16x128xf32>
    %8 = arith.mulf %0, %1 : vector<16x128xf32>
    %9 = arith.subf %7, %8 : vector<16x128xf32>
    %10 = math.log1p %5 : vector<16x128xf32>
    %11 = arith.addf %9, %10 : vector<16x128xf32>
    %cst_4 = arith.constant 0.000000e+00 : f32
    %12 = vector.broadcast %cst_4 : f32 to vector<16x128xf32>
    %13 = arith.cmpf oge, %0, %12 : vector<16x128xf32>
    %cst_5 = arith.constant 1.000000e+00 : f32
    %14 = vector.broadcast %cst_5 : f32 to vector<16x128xf32>
    %15 = arith.select %13, %14, %5 : vector<16x128xi1>, vector<16x128xf32>
    %cst_6 = arith.constant 1.000000e+00 : f32
    %16 = vector.broadcast %cst_6 : f32 to vector<16x128xf32>
    %17 = arith.addf %16, %5 : vector<16x128xf32>
    %18 = tpu.reciprocal %17 {approx = true} : vector<16x128xf32> -> vector<16x128xf32>
    %19 = arith.mulf %15, %18 : vector<16x128xf32>
    %cst_7 = arith.constant -5.000000e-01 : f32
    %20 = vector.broadcast %cst_7 : f32 to vector<16x128xf32>
    %21 = arith.mulf %1, %20 : vector<16x128xf32>
    %cst_8 = arith.constant 7.500000e-01 : f32
    %22 = vector.broadcast %cst_8 : f32 to vector<16x128xf32>
    %23 = arith.addf %21, %22 : vector<16x128xf32>
    %24 = arith.subf %1, %19 : vector<16x128xf32>
    %25 = math.absf %24 : vector<16x128xf32>
    %26 = math.sqrt %25 : vector<16x128xf32>
    %27 = arith.mulf %25, %26 : vector<16x128xf32>
    %28 = arith.mulf %11, %23 : vector<16x128xf32>
    %29 = arith.mulf %28, %27 : vector<16x128xf32>
    %30 = vector.shape_cast %29 : vector<16x128xf32> to vector<2x8x128xf32>
    %cst_9 = arith.constant dense<0.000000e+00> : vector<8x128xf32>
    %31 = vector.multi_reduction <add>, %30, %cst_9 [0] : vector<2x8x128xf32> to vector<8x128xf32>
    %c0_10 = arith.constant 0 : index
    %c0_11 = arith.constant 0 : index
    %32 = vector.load %arg3[%c0_10, %c0_11] : memref<8x128xf32, #tpu.memory_space<vmem>>, vector<8x128xf32>
    tpu.vector_store %arg3[%c0_10, %c0_11], %31 {strides = array<i32>} : memref<8x128xf32, #tpu.memory_space<vmem>>, vector<8x128xf32>,
    return
  }
  func.func @transform_0(%arg0: i32) -> (i32, i32) {
    %c0_i32 = arith.constant 0 : i32
    %c0_i32_0 = arith.constant 0 : i32
    return %arg0, %c0_i32 : i32, i32
  }
  func.func @transform_1(%arg0: i32) -> (i32, i32) {
    %c0_i32 = arith.constant 0 : i32
    %c0_i32_0 = arith.constant 0 : i32
    return %arg0, %c0_i32 : i32, i32
  }
  func.func @transform_2(%arg0: i32) -> (i32, i32) {
    %c0_i32 = arith.constant 0 : i32
    %c0_i32_0 = arith.constant 0 : i32
    return %arg0, %c0_i32 : i32, i32
  }
}

</mosaic_0001>

<llo_original>
// kernel: tpu_custom_call.1
$region0: #{tpu_custom_call.1}
  #allocation0 [shape = 'u32[]', space=smem, size = 0x4, offset = 0x4, fixed_abs, tag = 'smem constant byte address 0x4 - core index']
  #allocation1 [shape = 'u32[144,128]{1,0:T(1,128)}', space=vmem, size = 0x12000, scoped, tag = 'internal scratch']
  %s0 = inlined_call_operand.hbm [shape: f32[16,128], index: 0, kind: input, shape index: {}]
  %s1 = inlined_call_operand.hbm [shape: f32[16,128], index: 1, kind: input, shape index: {}]
  %s2 = inlined_call_operand.hbm [shape: f32[8,128], index: 2, kind: output, shape index: {}]
  %s3 = sld [smem:[#allocation0]]
  $region26: #{tpu_custom_call.1} parent=0
    _
  %s5 = ssub.s32 1, %s3
  %s6 = scalar_select 0, %s5, %s3
  $region1: #{tpu_custom_call.1} parent=0
    #allocation2 [shape = 'u8[8192]{0}', space=vmem, size = 0x2000, scoped, tag = 'input window, operand 0, single buffered']
    #allocation3 [shape = 's32[1]{0}', space=sflag, size = 0x4, scoped, tag = 'scoped memory for tpu_custom_call.1']
    #allocation4 [shape = 's32[1]{0}', space=sflag, size = 0x4, scoped, tag = 'scoped memory for tpu_custom_call.1']
    #allocation5 [shape = 'u8[8192]{0}', space=vmem, size = 0x2000, scoped, tag = 'input window, operand 1, single buffered']
    #allocation6 [shape = 's32[1]{0}', space=sflag, size = 0x4, scoped, tag = 'scoped memory for tpu_custom_call.1']
    #allocation7 [shape = 'u8[4096]{0}', space=vmem, size = 0x1000, scoped, tag = 'output window, operand 0, single buffered']
    %7 = vsyncpa [#allocation3], 0
    %8 = vsyncpa [#allocation6], 0
    %9 = vsyncpa [#allocation4], 0
    // Predicated region
    $region2: #{tpu_custom_call.1} parent=1 // pred_check
      _
    $region3: #{tpu_custom_call.1} parent=1 // pred_check_branch
      %11 = sbr.rel (0) target = $region5
    $region4: #{tpu_custom_call.1} parent=1 // pred_region
      %s13 = ssub.s32 256, 256
      %14 = vsyncadd [#allocation3], %s13
      %s15 = sshll.u32 [#allocation2], 4
      %s16 = int_to_ptr.vmem [resolvable:$true] %s15
      %21 = dma.hbm_to_vmem [thread:$0]  %s0, 256, %s16, [#allocation3], 128, 128, 8
    $region5: #{tpu_custom_call.1} parent=1 // pred_fallthru
      _
    // Predicated region
    $region6: #{tpu_custom_call.1} parent=1 // pred_check
      _
    $region7: #{tpu_custom_call.1} parent=1 // pred_check_branch
      %23 = sbr.rel (0) target = $region9
    $region8: #{tpu_custom_call.1} parent=1 // pred_region
      %s25 = ssub.s32 256, 256
      %26 = vsyncadd [#allocation6], %s25
      %s27 = sshll.u32 [#allocation5], 4
      %s28 = int_to_ptr.vmem [resolvable:$true] %s27
      %33 = dma.hbm_to_vmem [thread:$0]  %s1, 256, %s28, [#allocation6], 128, 128, 8
    $region9: #{tpu_custom_call.1} parent=1 // pred_fallthru
      _
    // Predicated region
    $region10: #{tpu_custom_call.1} parent=1 // pred_check
      _
    $region11: #{tpu_custom_call.1} parent=1 // pred_check_branch
      %35 = sbr.rel (0) target = $region13
    $region12: #{tpu_custom_call.1} parent=1 // pred_region
      %36 = dma.done [#allocation3], 256
    $region13: #{tpu_custom_call.1} parent=1 // pred_fallthru
      _
    // Predicated region
    $region14: #{tpu_custom_call.1} parent=1 // pred_check
      _
    $region15: #{tpu_custom_call.1} parent=1 // pred_check_branch
      %38 = sbr.rel (0) target = $region17
    $region16: #{tpu_custom_call.1} parent=1 // pred_region
      %39 = dma.done [#allocation6], 256
    $region17: #{tpu_custom_call.1} parent=1 // pred_fallthru
      _
    %v40 = vld [vmem:[#allocation2] sm:$0xff]
    %v41 = vld [vmem:[#allocation2 + $0x8] sm:$0xff]
    %v42 = vld [vmem:[#allocation5] sm:$0xff]
    %v43 = vld [vmem:[#allocation5 + $0x8] sm:$0xff]
    %v44 = vand.u32 2147483647, %v40
    %v45 = vand.u32 2147483647, %v41
    %v46 = vsub.f32 0.0, %v44
    %v47 = vsub.f32 0.0, %v45
    %v48 = vmul.f32 %v46, 1.442695
    %v49 = vpow.pop %v48
    %v50 = vmul.f32 %v47, 1.442695
    %v51 = vpow.pop %v50
    %v52 = vmax.f32 %v40, 0.0
    %v53 = vmax.f32 %v41, 0.0
    %v54 = vmul.f32 %v40, %v42
    %v55 = vmul.f32 %v41, %v43
    %v56 = vsub.f32 %v52, %v54
    %v57 = vsub.f32 %v53, %v55
    %v58 = vadd.f32 %v49, 1.0
    %v59 = vlog2.pop %v58
    %v60 = vmul.f32 %v59, 0.6931472
    %v61 = vmul.f32 -0.5, %v49
    %v62 = vadd.f32 %v61, 1.0
    %v63 = vmul.f32 %v62, %v49
    %v64 = vand.u32 2147483647, %v49
    %vm65 = vcmp.lt.f32.partialorder %v64, 0.0004427343
    %v66 = vsel %vm65, %v63, %v60
    %v67 = vadd.f32 %v51, 1.0
    %v68 = vlog2.pop %v67
    %v69 = vmul.f32 %v68, 0.6931472
    %v70 = vmul.f32 -0.5, %v51
    %v71 = vadd.f32 %v70, 1.0
    %v72 = vmul.f32 %v71, %v51
    %v73 = vand.u32 2147483647, %v51
    %vm74 = vcmp.lt.f32.partialorder %v73, 0.0004427343
    %v75 = vsel %vm74, %v72, %v69
    %v76 = vadd.f32 %v56, %v66
    %v77 = vadd.f32 %v57, %v75
    %vm78 = vcmp.ge.f32.partialorder %v40, 0.0
    %vm79 = vcmp.ge.f32.partialorder %v41, 0.0
    %v80 = vsel %vm78, 1.0, %v49
    %v81 = vsel %vm79, 1.0, %v51
    %v82 = vadd.f32 %v49, 1.0
    %v83 = vadd.f32 %v51, 1.0
    %v84 = vrcp.pop %v82
    %v85 = vrcp.pop %v83
    %v86 = vmul.f32 %v80, %v84
    %v87 = vmul.f32 %v81, %v85
    %v88 = vmul.f32 %v42, -0.5
    %v89 = vmul.f32 %v43, -0.5
    %v90 = vadd.f32 %v88, 0.75
    %v91 = vadd.f32 %v89, 0.75
    %v92 = vsub.f32 %v42, %v86
    %v93 = vsub.f32 %v43, %v87
    %v94 = vand.u32 2147483647, %v92
    %v95 = vand.u32 2147483647, %v93
    %v96 = vrsqrt.pop %v94
    %v97 = vmul.f32 %v94, %v96
    %vm98 = vcmp.eq.f32.partialorder %v94, inf
    %v99 = vsel %vm98, %v94, %v97
    %vm100 = vcmp.eq.f32.partialorder %v94, 0.0
    %v101 = vand.u32 %v94, 2147483648
    %v102 = vsel %vm100, %v101, %v99
    %v103 = vrsqrt.pop %v95
    %v104 = vmul.f32 %v95, %v103
    %vm105 = vcmp.eq.f32.partialorder %v95, inf
    %v106 = vsel %vm105, %v95, %v104
    %vm107 = vcmp.eq.f32.partialorder %v95, 0.0
    %v108 = vand.u32 %v95, 2147483648
    %v109 = vsel %vm107, %v108, %v106
    %v110 = vmul.f32 %v94, %v102
    %v111 = vmul.f32 %v95, %v109
    %v112 = vmul.f32 %v76, %v90
    %v113 = vmul.f32 %v77, %v91
    %v114 = vmul.f32 %v112, %v110
    %v115 = vmul.f32 %v113, %v111
    %v116 = vadd.f32 %v114, %v115
    %117 = vst [vmem:[#allocation7] sm:$0xff] %v116
    // Predicated region
    $region18: #{tpu_custom_call.1} parent=1 // pred_check
      _
    $region19: #{tpu_custom_call.1} parent=1 // pred_check_branch
      %119 = sbr.rel (0) target = $region21
    $region20: #{tpu_custom_call.1} parent=1 // pred_region
      %s121 = ssub.s32 128, 128
      %122 = vsyncadd [#allocation4], %s121
      %s124 = sshll.u32 [#allocation7], 4
      %s125 = int_to_ptr.vmem [resolvable:$true] %s124
      %127 = dma.vmem_to_hbm [thread:$0]  %s125, 128, %s2, [#allocation4]
    $region21: #{tpu_custom_call.1} parent=1 // pred_fallthru
      _
    // Predicated region
    $region22: #{tpu_custom_call.1} parent=1 // pred_check
      _
    $region23: #{tpu_custom_call.1} parent=1 // pred_check_branch
      %129 = sbr.rel (0) target = $region25
    $region24: #{tpu_custom_call.1} parent=1 // pred_region
      %130 = dma.done [#allocation4], 128
    $region25: #{tpu_custom_call.1} parent=1 // pred_fallthru
      _
    %131 = vsyncpa [#allocation3], 1
    %132 = vsyncpa [#allocation6], 1
    %133 = vsyncpa [#allocation4], 1

</llo_original>
